<compile_context>
chip_gen: v7x
topology: tpu7x:2x2x1
jax: 0.10.0
libtpu: 0.0.40
codegen_flags: <defaults>
</compile_context>

<pallas_src>
import functools

import jax
import jax.numpy as jnp
import numpy as np
from jax.experimental import pallas as pl
from jax.experimental.pallas import tpu as pltpu


def _round_up(x, m):
    return ((x + m - 1) // m) * m


def _cdiv(a, b):
    return (a + b - 1) // b


def _default_exp_dtype():
    """bf16 exp on v6e/v7x (packed bf16 EUP/VPU); f32 on v5e and older."""
    try:
        kind = jax.devices()[0].device_kind.lower()
    except Exception:
        return jnp.float32
    if any(tag in kind for tag in ("v2", "v3", "v4", "v5")):
        return jnp.float32
    return jnp.bfloat16


def _choose_tile_samples(n_samples, nverts_p, num_fibers, exp_bytes):
    """Largest multiple-of-8 sample tile fitting a conservative VMEM budget."""
    budget = 20 * 1024 * 1024  # headroom even on v7x (64 MiB per TensorCore)
    per_sample = (
        4 * nverts_p * (2 + num_fibers + 4)        # out dbuf + t(f32) + wide temps
        + exp_bytes * nverts_p * num_fibers        # t^2 scratch
        + 4 * 128 * (2 * num_fibers + 2))          # lane-padded param blocks
    ts = max(8, budget // max(per_sample, 1))
    ts = min(ts, 1024, max(n_samples, 8))
    if n_samples >= 16:
        ts = min(ts, (n_samples + 1) // 2)         # keep >= 2 tiles for megacore
    ts = max(8, (ts // 8) * 8)
    # rebalance so sample padding stays small
    num_tiles = _cdiv(n_samples, ts)
    ts = max(8, _round_up(_cdiv(n_samples, num_tiles), 8))
    return int(ts)


def _make_kernel(num_fibers, tile_samples, exp_dtype):
    F, TS = num_fibers, tile_samples

    def kernel(design_t_ref, dirs_ref, coeffs_ref, out_ref, t2_ref):
        # design_t_ref : (3, Vp)      f32   (resident, DMA'd once)
        # dirs_ref     : (F*TS, 3)    f32   (new block once per sample tile)
        # coeffs_ref   : (TS, 4*F)    f32   lanes per fiber: [z1, a1, a2, c2]
        # out_ref      : (TS, Vp)     f32   one dense slab per (tile, bval)
        # t2_ref       : (F*TS, Vp)   exp_dtype VMEM scratch, reused across bvals
        ib = pl.program_id(1)

        # t and t^2 are b-independent: compute once per sample tile.
        @pl.when(ib == 0)
        def _():
            t = jnp.dot(dirs_ref[...], design_t_ref[...],
                        preferred_element_type=jnp.float32)       # (F*TS, Vp)
            t2_ref[...] = (t * t).astype(t2_ref.dtype)

        coeffs = coeffs_ref[...]                                   # (TS, 4F)
        acc = None
        for f in range(F):
            z1 = coeffs[:, 4 * f + 0: 4 * f + 1]                   # (TS, 1)
            a1 = coeffs[:, 4 * f + 1: 4 * f + 2].astype(exp_dtype)
            a2 = coeffs[:, 4 * f + 2: 4 * f + 3].astype(exp_dtype)
            c2 = coeffs[:, 4 * f + 3: 4 * f + 4]
            t2_f = t2_ref[f * TS:(f + 1) * TS, :]                  # (TS, Vp)
            e1 = jnp.exp(a1 * t2_f).astype(jnp.float32)
            e2 = jnp.exp(a2 * t2_f).astype(jnp.float32)
            term = z1 * e1 + c2 * e2
            acc = term if acc is None else acc + term
        out_ref[...] = acc                                         # dense store

    return kernel


@functools.partial(jax.jit, static_argnames=("bvals", "tile_samples", "exp_dtype"))
def simulator_sm_direct_reparam(design, directs, fracs, shapes, bvals,
                                tile_samples=None, exp_dtype=None):
    design = jnp.asarray(design, jnp.float32)
    directs = jnp.asarray(directs, jnp.float32)
    fracs = jnp.asarray(fracs, jnp.float32)
    shapes = jnp.asarray(shapes, jnp.float32)

    n_samples, num_fibers, _ = directs.shape
    nverts = design.shape[0]
    nb = len(bvals)
    b_arr = jnp.asarray(bvals, jnp.float32)                        # (nb,)

    if exp_dtype is None:
        exp_dtype = _default_exp_dtype()
    exp_bytes = jnp.dtype(exp_dtype).itemsize

    # Lane-dense output: pad nverts up to a multiple of 128.
    nverts_p = _round_up(max(nverts, 128), 128)

    if tile_samples is None:
        tile_samples = _choose_tile_samples(n_samples, nverts_p, num_fibers, exp_bytes)
    ts = int(tile_samples)
    assert ts % 8 == 0, "tile_samples must be a multiple of 8"

    n_samples_p = _round_up(n_samples, ts)
    num_tiles = n_samples_p // ts
    pad_s = n_samples_p - n_samples

    # design^T, vert-padded -> (3, Vp)
    design_t = jnp.zeros((3, nverts_p), jnp.float32).at[:, :nverts].set(design.T)

    # Fiber directions, fiber-major within each sample tile -> (num_tiles*F*ts, 3)
    dirs = directs
    if pad_s:
        dirs = jnp.pad(dirs, ((0, pad_s), (0, 0), (0, 0)))
    dirs = dirs.reshape(num_tiles, ts, num_fibers, 3)
    dirs = jnp.transpose(dirs, (0, 2, 1, 3)).reshape(num_tiles * num_fibers * ts, 3)

    # Narrow t^2-independent coefficients, precomputed once on the XLA side:
    #   term = z1*exp(a1*t^2) + c2*exp(a2*t^2)
    D_a, D_par, D_perp = shapes[..., 0], shapes[..., 1], shapes[..., 2]   # (Ns, F)
    z1, z2 = fracs[..., 0], fracs[..., 1]                                 # (Ns, F)
    bb = b_arr[None, :, None]                                             # (1, nb, 1)
    a1 = -bb * D_a[:, None, :]                                            # (Ns, nb, F)
    a2 = -bb * (D_par - D_perp)[:, None, :]
    c2 = z2[:, None, :] * jnp.exp(-bb * D_perp[:, None, :])
    z1b = jnp.broadcast_to(z1[:, None, :], a1.shape)
    coeffs = jnp.stack([z1b, a1, a2, c2], axis=-1)                        # (Ns, nb, F, 4)
    coeffs = coeffs.reshape(n_samples, nb, 4 * num_fibers)
    if pad_s:
        coeffs = jnp.pad(coeffs, ((0, pad_s), (0, 0), (0, 0)))
    coeffs = coeffs.reshape(num_tiles, ts, nb, 4 * num_fibers)
    coeffs = jnp.transpose(coeffs, (0, 2, 1, 3)).reshape(
        num_tiles * nb * ts, 4 * num_fibers)

    kernel = _make_kernel(num_fibers, ts, exp_dtype)

    out2d = pl.pallas_call(
        kernel,
        out_shape=jax.ShapeDtypeStruct((num_tiles * nb * ts, nverts_p), jnp.float32),
        grid_spec=pltpu.PrefetchScalarGridSpec(
            num_scalar_prefetch=0,
            grid=(num_tiles, nb),
            in_specs=[
                # design_t: same block every step -> DMA'd once, resident
                pl.BlockSpec((3, nverts_p), lambda i, ib: (0, 0)),
                # fiber directions: one DMA per sample tile (invariant in ib)
                pl.BlockSpec((num_fibers * ts, 3), lambda i, ib: (i, 0)),
                # per-(tile, bval) narrow coefficients
                pl.BlockSpec((ts, 4 * num_fibers), lambda i, ib: (i * nb + ib, 0)),
            ],
            # flat (tiles*nb*ts, Vp) output -> every store is a dense (ts, Vp) slab
            out_specs=pl.BlockSpec((ts, nverts_p), lambda i, ib: (i * nb + ib, 0)),
            scratch_shapes=[pltpu.VMEM((num_fibers * ts, nverts_p), exp_dtype)],
        ),
        compiler_params=pltpu.CompilerParams(
            dimension_semantics=("parallel", "arbitrary"),
            vmem_limit_bytes=40 * 1024 * 1024),
    )(design_t, dirs, coeffs)

    # (tile, b, sample, vert) -> torch layout (sample, b, vert).  XLA fuses this
    # transpose with the un-padding slice into one copy.
    out = out2d.reshape(num_tiles, nb, ts, nverts_p)
    out = jnp.transpose(out, (0, 2, 1, 3)).reshape(n_samples_p, nb, nverts_p)
    return {"Stensor": out[:n_samples, :, :nverts]}


def _reference(design, directs, fracs, shapes, bvals):
    """Pure-JAX reference mirroring the torch loop structure (exact f32 dots)."""
    design = jnp.asarray(design, jnp.float32)
    directs = jnp.asarray(directs, jnp.float32)
    fracs = jnp.asarray(fracs, jnp.float32)
    shapes = jnp.asarray(shapes, jnp.float32)
    out = jnp.zeros((directs.shape[0], len(bvals), design.shape[0]), jnp.float32)
    for nf in range(directs.shape[1]):
        # elementwise inner product (avoids MXU rounding in the reference)
        t = jnp.sum(directs[:, nf, None, :] * design[None, :, :], axis=-1)
        t2 = t * t
        D_a = shapes[:, nf, 0:1]
        D_par = shapes[:, nf, 1:2]
        D_perp = shapes[:, nf, 2:3]
        z1 = fracs[:, nf, 0:1]
        z2 = fracs[:, nf, 1:2]
        for ib, b in enumerate(bvals):
            fwd = (z1 * jnp.exp(-b * D_a * t2)
                   + z2 * jnp.exp(-b * D_perp - b * (D_par - D_perp) * t2))
            out = out.at[:, ib, :].add(fwd)
    return out


if __name__ == "__main__":
    key = jax.random.PRNGKey(0)
    k1, k2, k3, k4 = jax.random.split(key, 4)

    Nsamples, num_fibers, nverts = 16, 2, 32
    bvals = (0.1, 1.0, 2.5)

    design = jax.random.normal(k1, (nverts, 3), jnp.float32)
    design = design / jnp.linalg.norm(design, axis=-1, keepdims=True)

    directs = jax.random.normal(k2, (Nsamples, num_fibers, 3), jnp.float32)
    directs = directs / jnp.linalg.norm(directs, axis=-1, keepdims=True)

    # D_a, D_e_parallel, D_e_perp (positive diffusivities)
    shapes = jax.random.uniform(k3, (Nsamples, num_fibers, 3), jnp.float32,
                                minval=0.3, maxval=2.5)
    # z_1, z_2 (signal fractions)
    fracs = jax.random.uniform(k4, (Nsamples, num_fibers, 2), jnp.float32,
                               minval=0.0, maxval=1.0)

    out = simulator_sm_direct_reparam(design, directs, fracs, shapes, bvals=bvals)
    stensor = jax.block_until_ready(out["Stensor"])
    assert stensor.shape == (Nsamples, len(bvals), nverts)

    ref = np.asarray(_reference(design, directs, fracs, shapes, bvals))
    used_bf16 = _default_exp_dtype() == jnp.bfloat16
    tol = dict(rtol=3e-2, atol=3e-2) if used_bf16 else dict(rtol=1e-4, atol=1e-4)
    np.testing.assert_allclose(np.asarray(stensor), ref, **tol)
    print("KERNEL_OK")
</pallas_src>

<mosaic_0001>
module attributes {stable_mosaic.version = 11 : i64} {
  func.func @kernel(%arg0: i32, %arg1: i32, %arg2: memref<3x128xf32, #tpu.memory_space<vmem>>, %arg3: memref<16x3xf32, #tpu.memory_space<vmem>>, %arg4: memref<8x8xf32, #tpu.memory_space<vmem>>, %arg5: memref<8x128xf32, #tpu.memory_space<vmem>>, %arg6: memref<16x128xbf16, #tpu.memory_space<vmem>>) attributes {dimension_semantics = [#tpu.dimension_semantics<parallel>, #tpu.dimension_semantics<arbitrary>], iteration_bounds = array<i64: 2, 3>, scalar_prefetch = 0 : i64, scratch_operands = 1 : i64, tpu.core_type = #tpu.core_type<tc>, window_params = [{pipeline_mode = #tpu.pipeline_mode<synchronous>, transform_indices = @transform_0, window_bounds = array<i64: 3, 128>}, {transform_indices = @transform_1, window_bounds = array<i64: 16, 3>}, {transform_indices = @transform_2, window_bounds = array<i64: 8, 8>}, {transform_indices = @transform_3, window_bounds = array<i64: 8, 128>}]} {
    %c0_i32 = arith.constant 0 : i32
    %0 = arith.cmpi eq, %arg1, %c0_i32 : i32
    %1 = arith.extui %0 : i1 to i32
    %c0_i32_0 = arith.constant 0 : i32
    %2 = arith.cmpi ne, %1, %c0_i32_0 : i32
    scf.if %2 {
      %c0_7 = arith.constant 0 : index
      %c0_8 = arith.constant 0 : index
      %46 = vector.load %arg3[%c0_7, %c0_8] : memref<16x3xf32, #tpu.memory_space<vmem>>, vector<16x3xf32>
      %c0_9 = arith.constant 0 : index
      %c0_10 = arith.constant 0 : index
      %47 = vector.load %arg2[%c0_9, %c0_10] : memref<3x128xf32, #tpu.memory_space<vmem>>, vector<3x128xf32>
      %cst = arith.constant dense<0.000000e+00> : vector<16x128xf32>
      %48 = tpu.matmul %46, %47, %cst {dimension_numbers = #tpu.dot_dimension_numbers<[1], [0], [0], [1], [0, 0, 1, 1], [], []>} : vector<16x3xf32>, vector<3x128xf32>, vector<16x128xf32> -> vector<16x128xf32>
      %49 = arith.mulf %48, %48 : vector<16x128xf32>
      %50 = arith.truncf %49 : vector<16x128xf32> to vector<16x128xbf16>
      %c0_11 = arith.constant 0 : index
      %c0_12 = arith.constant 0 : index
      %51 = vector.load %arg6[%c0_11, %c0_12] : memref<16x128xbf16, #tpu.memory_space<vmem>>, vector<16x128xbf16>
      tpu.vector_store %arg6[%c0_11, %c0_12], %50 {strides = array<i32>} : memref<16x128xbf16, #tpu.memory_space<vmem>>, vector<16x128xbf16>,
    } else {
    }
    %c0 = arith.constant 0 : index
    %c0_1 = arith.constant 0 : index
    %3 = vector.load %arg4[%c0, %c0_1] : memref<8x8xf32, #tpu.memory_space<vmem>>, vector<8x8xf32>
    %4 = vector.extract_strided_slice %3 {offsets = [0, 0], sizes = [8, 1], strides = [1, 1]} : vector<8x8xf32> to vector<8x1xf32>
    %5 = vector.extract_strided_slice %3 {offsets = [0, 1], sizes = [8, 1], strides = [1, 1]} : vector<8x8xf32> to vector<8x1xf32>
    %6 = arith.truncf %5 : vector<8x1xf32> to vector<8x1xbf16>
    %7 = vector.extract_strided_slice %3 {offsets = [0, 2], sizes = [8, 1], strides = [1, 1]} : vector<8x8xf32> to vector<8x1xf32>
    %8 = arith.truncf %7 : vector<8x1xf32> to vector<8x1xbf16>
    %9 = vector.extract_strided_slice %3 {offsets = [0, 3], sizes = [8, 1], strides = [1, 1]} : vector<8x8xf32> to vector<8x1xf32>
    %c0_2 = arith.constant 0 : index
    %c0_3 = arith.constant 0 : index
    %10 = vector.load %arg6[%c0_2, %c0_3] : memref<16x128xbf16, #tpu.memory_space<vmem>>, vector<8x128xbf16>
    %11 = vector.broadcast %6 : vector<8x1xbf16> to vector<8x128xbf16>
    %12 = arith.mulf %11, %10 : vector<8x128xbf16>
    %13 = math.exp %12 : vector<8x128xbf16>
    %14 = arith.extf %13 : vector<8x128xbf16> to vector<8x128xf32>
    %15 = vector.broadcast %8 : vector<8x1xbf16> to vector<8x128xbf16>
    %16 = arith.mulf %15, %10 : vector<8x128xbf16>
    %17 = math.exp %16 : vector<8x128xbf16>
    %18 = arith.extf %17 : vector<8x128xbf16> to vector<8x128xf32>
    %19 = vector.broadcast %4 : vector<8x1xf32> to vector<8x128xf32>
    %20 = arith.mulf %19, %14 : vector<8x128xf32>
    %21 = vector.broadcast %9 : vector<8x1xf32> to vector<8x128xf32>
    %22 = arith.mulf %21, %18 : vector<8x128xf32>
    %23 = arith.addf %20, %22 : vector<8x128xf32>
    %24 = vector.extract_strided_slice %3 {offsets = [0, 4], sizes = [8, 1], strides = [1, 1]} : vector<8x8xf32> to vector<8x1xf32>
    %25 = vector.extract_strided_slice %3 {offsets = [0, 5], sizes = [8, 1], strides = [1, 1]} : vector<8x8xf32> to vector<8x1xf32>
    %26 = arith.truncf %25 : vector<8x1xf32> to vector<8x1xbf16>
    %27 = vector.extract_strided_slice %3 {offsets = [0, 6], sizes = [8, 1], strides = [1, 1]} : vector<8x8xf32> to vector<8x1xf32>
    %28 = arith.truncf %27 : vector<8x1xf32> to vector<8x1xbf16>
    %29 = vector.extract_strided_slice %3 {offsets = [0, 7], sizes = [8, 1], strides = [1, 1]} : vector<8x8xf32> to vector<8x1xf32>
    %c8 = arith.constant 8 : index
    %c0_4 = arith.constant 0 : index
    %30 = vector.load %arg6[%c8, %c0_4] : memref<16x128xbf16, #tpu.memory_space<vmem>>, vector<8x128xbf16>
    %31 = vector.broadcast %26 : vector<8x1xbf16> to vector<8x128xbf16>
    %32 = arith.mulf %31, %30 : vector<8x128xbf16>
    %33 = math.exp %32 : vector<8x128xbf16>
    %34 = arith.extf %33 : vector<8x128xbf16> to vector<8x128xf32>
    %35 = vector.broadcast %28 : vector<8x1xbf16> to vector<8x128xbf16>
    %36 = arith.mulf %35, %30 : vector<8x128xbf16>
    %37 = math.exp %36 : vector<8x128xbf16>
    %38 = arith.extf %37 : vector<8x128xbf16> to vector<8x128xf32>
    %39 = vector.broadcast %24 : vector<8x1xf32> to vector<8x128xf32>
    %40 = arith.mulf %39, %34 : vector<8x128xf32>
    %41 = vector.broadcast %29 : vector<8x1xf32> to vector<8x128xf32>
    %42 = arith.mulf %41, %38 : vector<8x128xf32>
    %43 = arith.addf %40, %42 : vector<8x128xf32>
    %44 = arith.addf %23, %43 : vector<8x128xf32>
    %c0_5 = arith.constant 0 : index
    %c0_6 = arith.constant 0 : index
    %45 = vector.load %arg5[%c0_5, %c0_6] : memref<8x128xf32, #tpu.memory_space<vmem>>, vector<8x128xf32>
    tpu.vector_store %arg5[%c0_5, %c0_6], %44 {strides = array<i32>} : memref<8x128xf32, #tpu.memory_space<vmem>>, vector<8x128xf32>,
    return
  }
  func.func @transform_0(%arg0: i32, %arg1: i32) -> (i32, i32) {
    %c0_i32 = arith.constant 0 : i32
    %c0_i32_0 = arith.constant 0 : i32
    %c0_i32_1 = arith.constant 0 : i32
    return %c0_i32, %c0_i32_0 : i32, i32
  }
  func.func @transform_1(%arg0: i32, %arg1: i32) -> (i32, i32) {
    %c0_i32 = arith.constant 0 : i32
    %c0_i32_0 = arith.constant 0 : i32
    return %arg0, %c0_i32 : i32, i32
  }
  func.func @transform_2(%arg0: i32, %arg1: i32) -> (i32, i32) {
    %c3_i32 = arith.constant 3 : i32
    %0 = arith.muli %arg0, %c3_i32 : i32
    %1 = arith.addi %0, %arg1 : i32
    %c0_i32 = arith.constant 0 : i32
    %c0_i32_0 = arith.constant 0 : i32
    return %1, %c0_i32 : i32, i32
  }
  func.func @transform_3(%arg0: i32, %arg1: i32) -> (i32, i32) {
    %c3_i32 = arith.constant 3 : i32
    %0 = arith.muli %arg0, %c3_i32 : i32
    %1 = arith.addi %0, %arg1 : i32
    %c0_i32 = arith.constant 0 : i32
    %c0_i32_0 = arith.constant 0 : i32
    return %1, %c0_i32 : i32, i32
  }
}

</mosaic_0001>

<llo_original>
// kernel: simulator_sm_direct_reparam.1
$region0: #{simulator_sm_direct_reparam.1}
  #allocation0 [shape = 'u32[]', space=smem, size = 0x4, offset = 0x4, fixed_abs, tag = 'smem constant byte address 0x4 - core index']
  #allocation1 [shape = 'u32[144,128]{1,0:T(1,128)}', space=vmem, size = 0x12000, scoped, tag = 'internal scratch']
  #allocation2 [shape = 'bf16[16,128]{1,0:T(16,128)(2,1)}', space=vmem, size = 0x1000, scoped, tag = 'scratch operand']
  %s0 = inlined_call_operand.vmem [shape: f32[3,128], index: 0, kind: input, shape index: {}]
  %s1 = inlined_call_operand.vmem [shape: f32[32,3], index: 1, kind: input, shape index: {}]
  %s2 = inlined_call_operand.vmem [shape: f32[48,8], index: 2, kind: input, shape index: {}]
  %s3 = inlined_call_operand.vmem [shape: f32[48,128], index: 3, kind: output, shape index: {}]
  %s4 = sld [smem:[#allocation0]]
  $region49: #{simulator_sm_direct_reparam.1} parent=0
    _
  %s6 = ssub.s32 1, %s4
  %s7 = scalar_select 0, %s6, %s4
  loop: start=0, step=1, limit=8
  $region2: #{simulator_sm_direct_reparam.1} parent=0 // loop_pre_header
    _
  $region3: #{simulator_sm_direct_reparam.1} parent=0 // loop_header
    %s9 = sphi 0, %s13
    %p10 = scmp.ge.s32.totalorder %s9, 8
    %s16 = sphi 0, %s28
    %s17 = sphi 0, %s24
    %s18 = sphi 0, %s16
    %s19 = sphi 0, %s17
    %s20 = sphi 0, %s18
    %s21 = sphi 0, %s19
    %s29 = sphi 0, %s29
    %s31 = sphi 0, %s29
    %s32 = sphi 0, %s31
    %s46 = sphi 0, %s32
    %s52 = sphi 0, %s54
    %s55 = sphi 0, %s52
    %s56 = sphi 0, %s55
    %s72 = sphi 0, %s56
    %s82 = sphi 0, %s84
    %s85 = sphi 0, %s82
    %s86 = sphi 0, %s85
    %s102 = sphi 0, %s86
    %s112 = sphi 0, %s114
    %s115 = sphi 0, %s112
    %s116 = sphi 0, %s115
    %s132 = sphi 0, %s116
  $region4: #{simulator_sm_direct_reparam.1} parent=0 // loop_header_branch
    %12 = sbr.rel (%p10) target = $region8
  $region5: #{simulator_sm_direct_reparam.1} parent=0 // loop_body
    %s14 = ssub.s32 %s9, 1
    %s15 = ssub.s32 %s9, 2
    %s22 = sadd.s32 1, %s17
    %p23 = scmp.ge.s32.totalorder %s22, 3
    %s24 = scalar_select %p23, 0, %s22
    %s25 = sadd.s32 1, %s16
    %s26 = scalar_select %p23, %s25, %s16
    %p27 = scmp.ge.s32.totalorder %s26, 2
    %s28 = scalar_select %p27, 0, %s26
    %s30 = sadd.s32 %s29, 1
    %p33 = scmp.eq.s32.totalorder %s9, 5
    %p34 = scmp.ne.s32.totalorder %s29, %s31
    %p35 = scmp.eq.s32.totalorder %s9, 0
    %p36 = por %p34, %p35
    %p37 = scmp.ne.s32.totalorder %s29, %s31
    %p38 = scmp.eq.s32.totalorder %s14, 5
    %p39 = por %p37, %p38
    %p40 = scmp.ne.s32.totalorder %s31, %s32
    %p41 = scmp.eq.s32.totalorder %s14, 0
    %p42 = por %p40, %p41
    %p43 = scmp.ne.s32.totalorder %s31, %s32
    %p44 = scmp.eq.s32.totalorder %s15, 5
    %p45 = por %p43, %p44
    %p47 = scmp.ne.s32.totalorder %s32, %s46
    %p48 = scmp.eq.s32.totalorder %s15, 0
    %p49 = por %p47, %p48
    %s50 = ssub.s32 %s16, %s28
    %p51 = scmp.eq.s32.totalorder %s50, 0
    %s53 = sadd.s32 %s52, 1
    %s54 = scalar_select %p51, %s52, %s53
    %p57 = pneg %p51
    %p58 = scmp.eq.s32.totalorder %s9, 5
    %p59 = por %p57, %p58
    %p60 = scmp.ne.s32.totalorder %s52, %s55
    %p61 = scmp.eq.s32.totalorder %s9, 0
    %p62 = por %p60, %p61
    %p63 = scmp.ne.s32.totalorder %s52, %s55
    %p64 = scmp.eq.s32.totalorder %s14, 5
    %p65 = por %p63, %p64
    %p66 = scmp.ne.s32.totalorder %s55, %s56
    %p67 = scmp.eq.s32.totalorder %s14, 0
    %p68 = por %p66, %p67
    %p69 = scmp.ne.s32.totalorder %s55, %s56
    %p70 = scmp.eq.s32.totalorder %s15, 5
    %p71 = por %p69, %p70
    %p73 = scmp.ne.s32.totalorder %s56, %s72
    %p74 = scmp.eq.s32.totalorder %s15, 0
    %p75 = por %p73, %p74
    %s76 = smul.u32 %s16, 3
    %s77 = sadd.s32 %s76, %s17
    %s78 = smul.u32 %s28, 3
    %s79 = sadd.s32 %s78, %s24
    %s80 = ssub.s32 %s77, %s79
    %p81 = scmp.eq.s32.totalorder %s80, 0
    %s83 = sadd.s32 %s82, 1
    %s84 = scalar_select %p81, %s82, %s83
    %p87 = pneg %p81
    %p88 = scmp.eq.s32.totalorder %s9, 5
    %p89 = por %p87, %p88
    %p90 = scmp.ne.s32.totalorder %s82, %s85
    %p91 = scmp.eq.s32.totalorder %s9, 0
    %p92 = por %p90, %p91
    %p93 = scmp.ne.s32.totalorder %s82, %s85
    %p94 = scmp.eq.s32.totalorder %s14, 5
    %p95 = por %p93, %p94
    %p96 = scmp.ne.s32.totalorder %s85, %s86
    %p97 = scmp.eq.s32.totalorder %s14, 0
    %p98 = por %p96, %p97
    %p99 = scmp.ne.s32.totalorder %s85, %s86
    %p100 = scmp.eq.s32.totalorder %s15, 5
    %p101 = por %p99, %p100
    %p103 = scmp.ne.s32.totalorder %s86, %s102
    %p104 = scmp.eq.s32.totalorder %s15, 0
    %p105 = por %p103, %p104
    %s106 = smul.u32 %s16, 3
    %s107 = sadd.s32 %s106, %s17
    %s108 = smul.u32 %s28, 3
    %s109 = sadd.s32 %s108, %s24
    %s110 = ssub.s32 %s107, %s109
    %p111 = scmp.eq.s32.totalorder %s110, 0
    %s113 = sadd.s32 %s112, 1
    %s114 = scalar_select %p111, %s112, %s113
    %p117 = pneg %p111
    %p118 = scmp.eq.s32.totalorder %s9, 5
    %p119 = por %p117, %p118
    %p120 = scmp.ne.s32.totalorder %s112, %s115
    %p121 = scmp.eq.s32.totalorder %s9, 0
    %p122 = por %p120, %p121
    %p123 = scmp.ne.s32.totalorder %s112, %s115
    %p124 = scmp.eq.s32.totalorder %s14, 5
    %p125 = por %p123, %p124
    %p126 = scmp.ne.s32.totalorder %s115, %s116
    %p127 = scmp.eq.s32.totalorder %s14, 0
    %p128 = por %p126, %p127
    %p129 = scmp.ne.s32.totalorder %s115, %s116
    %p130 = scmp.eq.s32.totalorder %s15, 5
    %p131 = por %p129, %p130
    %p133 = scmp.ne.s32.totalorder %s116, %s132
    %p134 = scmp.eq.s32.totalorder %s15, 0
    %p135 = por %p133, %p134
    %p136 = scmp.le.s32.totalorder 1, %s9
    %p137 = scmp.lt.s32.totalorder %s9, 7
    %p138 = pnand %p136, %p137
    %p139 = pneg %p138
    // Predicated region
    $region9: #{simulator_sm_direct_reparam.1} parent=5 // pred_check
      _
    $region10: #{simulator_sm_direct_reparam.1} parent=5 // pred_check_branch
      %141 = sbr.rel (%p138) target = $region12
    $region11: #{simulator_sm_direct_reparam.1} parent=5 // pred_region
      %s142 = ssub.s32 %s9, 1
      // Predicated region
      $region13: #{simulator_sm_direct_reparam.1} parent=11 // pred_check
        %p143 = pneg %p42
      $region14: #{simulator_sm_direct_reparam.1} parent=11 // pred_check_branch
        %145 = sbr.rel (%p143) target = $region16
      $region15: #{simulator_sm_direct_reparam.1} parent=11 // pred_region
        _
      $region16: #{simulator_sm_direct_reparam.1} parent=11 // pred_fallthru
        _
    $region12: #{simulator_sm_direct_reparam.1} parent=5 // pred_fallthru
      _
    %p146 = scmp.lt.s32.totalorder %s9, 6
    // Predicated region
    $region17: #{simulator_sm_direct_reparam.1} parent=5 // pred_check
      %p147 = pneg %p146
    $region18: #{simulator_sm_direct_reparam.1} parent=5 // pred_check_branch
      %149 = sbr.rel (%p147) target = $region20
    $region19: #{simulator_sm_direct_reparam.1} parent=5 // pred_region
      // Predicated region
      $region21: #{simulator_sm_direct_reparam.1} parent=19 // pred_check
        %p150 = pneg %p62
      $region22: #{simulator_sm_direct_reparam.1} parent=19 // pred_check_branch
        %152 = sbr.rel (%p150) target = $region24
      $region23: #{simulator_sm_direct_reparam.1} parent=19 // pred_region
        %s153 = smul.u32 2, %s16
        %p154 = scmp.lt.s32.totalorder %s153, 3
        %s155 = scalar_select %p154, %s153, 3
        %s156 = smul.addr %s155, 8
        %s157 = scalar_lea.vmem %s1, %s156
        %s158 = smul.u32 2, %s16
      $region24: #{simulator_sm_direct_reparam.1} parent=19 // pred_fallthru
        _
      // Predicated region
      $region25: #{simulator_sm_direct_reparam.1} parent=19 // pred_check
        %p159 = pneg %p92
      $region26: #{simulator_sm_direct_reparam.1} parent=19 // pred_check_branch
        %161 = sbr.rel (%p159) target = $region28
      $region27: #{simulator_sm_direct_reparam.1} parent=19 // pred_region
        %s162 = smul.u32 %s16, 3
        %s163 = sadd.s32 %s162, %s17
        %p164 = scmp.lt.s32.totalorder %s163, 5
        %s165 = scalar_select %p164, %s163, 5
        %s166 = smul.addr %s165, 8
        %s167 = scalar_lea.vmem %s2, %s166
        %s168 = smul.u32 %s16, 3
        %s169 = sadd.s32 %s168, %s17
      $region28: #{simulator_sm_direct_reparam.1} parent=19 // pred_fallthru
        _
    $region20: #{simulator_sm_direct_reparam.1} parent=5 // pred_fallthru
      _
    %p170 = scmp.le.s32.totalorder 1, %s9
    %p171 = scmp.lt.s32.totalorder %s9, 7
    %p172 = pnand %p170, %p171
    %p173 = pneg %p172
    // Predicated region
    $region29: #{simulator_sm_direct_reparam.1} parent=5 // pred_check
      _
    $region30: #{simulator_sm_direct_reparam.1} parent=5 // pred_check_branch
      %175 = sbr.rel (%p172) target = $region32
    $region31: #{simulator_sm_direct_reparam.1} parent=5 // pred_region
      %s176 = ssub.s32 %s9, 1
      %p177 = pneg %p42
      %p178 = pneg %p39
      %s179 = smul.u32 2, %s18
      %p180 = scmp.lt.s32.totalorder %s179, 3
      %s181 = scalar_select %p180, %s179, 3
      %s182 = smul.addr %s181, 8
      %s183 = scalar_lea.vmem %s1, %s182
      %p184 = pneg %p68
      %p185 = pneg %p65
      %s186 = smul.u32 %s18, 3
      %s187 = sadd.s32 %s186, %s19
      %p188 = scmp.lt.s32.totalorder %s187, 5
      %s189 = scalar_select %p188, %s187, 5
      %s190 = smul.addr %s189, 8
      %s191 = scalar_lea.vmem %s2, %s190
      %p192 = pneg %p98
      %p193 = pneg %p95
      %p194 = pneg %p128
      %p195 = pneg %p125
      %s196 = smul.u32 %s18, 3
      %s197 = sadd.s32 %s196, %s19
      %p198 = scmp.lt.s32.totalorder %s197, 5
      %s199 = scalar_select %p198, %s197, 5
      %s200 = smul.addr %s199, 8
      %s201 = scalar_lea.vmem %s3, %s200
      %s202 = smul.u32 2, %s18
      %p203 = scmp.lt.s32.totalorder %s202, 3
      %s204 = scalar_select %p203, %s202, 3
      %s205 = smul.addr %s204, 8
      %s206 = scalar_lea.vmem %s1, %s205
      %s207 = smul.u32 2, %s18
      %s208 = smul.u32 %s18, 3
      %s209 = sadd.s32 %s208, %s19
      %p210 = scmp.lt.s32.totalorder %s209, 5
      %s211 = scalar_select %p210, %s209, 5
      %s212 = smul.addr %s211, 8
      %s213 = scalar_lea.vmem %s2, %s212
      %s214 = smul.u32 %s18, 3
      %s215 = sadd.s32 %s214, %s19
      %s216 = smul.u32 %s18, 3
      %s217 = sadd.s32 %s216, %s19
      %p218 = scmp.lt.s32.totalorder %s217, 5
      %s219 = scalar_select %p218, %s217, 5
      %s220 = smul.addr %s219, 8
      %s221 = scalar_lea.vmem %s3, %s220
      %s222 = smul.u32 %s18, 3
      %s223 = sadd.s32 %s222, %s19
      %p224 = scmp.eq.s32.totalorder %s19, 0
      // Predicated region
      $region33: #{simulator_sm_direct_reparam.1} parent=31 // pred_check
        %p225 = pneg %p224
      $region34: #{simulator_sm_direct_reparam.1} parent=31 // pred_check_branch
        %227 = sbr.rel (%p225) target = $region36
      $region35: #{simulator_sm_direct_reparam.1} parent=31 // pred_region
        %v228 = vld [vmem:[%s206] sm:$0xff]
        %v229 = vld [vmem:[%s206 + $0x8] sm:$0xff]
        %v230 = vld [vmem:[%s0] sm:$0x7]
        %vm231 = vcmask 23552
        %v233 = vsel %vm231, %v228, 0
        %v236 = vsel %vm231, %v229, 0
        %vm238 = vcmask 1042432
        %v240 = vsel %vm238, %v230, 0
        %242 = vmatprep.subr.mxu0 0.0
        %243 = vmatpush1.msra.mxu0 %v240
        %244 = vmatprep.subr.mxu0 0.0
        %245 = vmatpush1.msra.mxu0 0.0
        %246 = vmatprep.subr.mxu0 0.0
        %247 = vmatpush1.msra.mxu0 0.0
        %248 = vmatprep.subr.mxu0 0.0
        %249 = vmatpush1.msra.mxu0 0.0
        %250 = vmatprep.subr.mxu0 0.0
        %251 = vmatpush1.msra.mxu0 0.0
        %252 = vmatprep.subr.mxu0 0.0
        %253 = vmatpush1.msra.mxu0 0.0
        %254 = vmatprep.subr.mxu0 0.0
        %255 = vmatpush1.msra.mxu0 0.0
        %256 = vmatprep.subr.mxu0 0.0
        %257 = vmatpush1.msra.mxu0 0.0
        %258 = vmatprep.subr.mxu0 0.0
        %259 = vmatpush1.msra.mxu0 0.0
        %260 = vmatprep.subr.mxu0 0.0
        %261 = vmatpush1.msra.mxu0 0.0
        %262 = vmatprep.subr.mxu0 0.0
        %263 = vmatpush1.msra.mxu0 0.0
        %264 = vmatprep.subr.mxu0 0.0
        %265 = vmatpush1.msra.mxu0 0.0
        %266 = vmatprep.subr.mxu0 0.0
        %267 = vmatpush1.msra.mxu0 0.0
        %268 = vmatprep.subr.mxu0 0.0
        %269 = vmatpush1.msra.mxu0 0.0
        %270 = vmatprep.subr.mxu0 0.0
        %271 = vmatpush1.msra.mxu0 0.0
        %272 = vmatprep.subr.mxu0 0.0
        %273 = vmatpush1.msra.mxu0 0.0
        %274 = vmatprep.subr.mxu0 0.0
        %275 = vmatpush1.msra.mxu0 0.0
        %276 = vmatprep.subr.mxu0 0.0
        %277 = vmatpush1.msra.mxu0 0.0
        %278 = vmatprep.subr.mxu0 0.0
        %279 = vmatpush1.msra.mxu0 0.0
        %280 = vmatprep.subr.mxu0 0.0
        %281 = vmatpush1.msra.mxu0 0.0
        %282 = vmatprep.subr.mxu0 0.0
        %283 = vmatpush1.msra.mxu0 0.0
        %284 = vmatprep.subr.mxu0 0.0
        %285 = vmatpush1.msra.mxu0 0.0
        %286 = vmatprep.subr.mxu0 0.0
        %287 = vmatpush1.msra.mxu0 0.0
        %288 = vmatprep.subr.mxu0 0.0
        %289 = vmatpush1.msra.mxu0 0.0
        %290 = vmatprep.subr.mxu0 0.0
        %291 = vmatpush1.msra.mxu0 0.0
        %292 = vmatprep.subr.mxu0 0.0
        %293 = vmatpush1.msra.mxu0 0.0
        %294 = vmatprep.subr.mxu0 0.0
        %295 = vmatpush1.msra.mxu0 0.0
        %296 = vmatprep.subr.mxu0 0.0
        %297 = vmatpush1.msra.mxu0 0.0
        %298 = vmatprep.subr.mxu0 0.0
        %299 = vmatpush1.msra.mxu0 0.0
        %300 = vmatprep.subr.mxu0 0.0
        %301 = vmatpush1.msra.mxu0 0.0
        %302 = vmatprep.subr.mxu0 0.0
        %303 = vmatpush1.msra.mxu0 0.0
        %304 = vmatprep.subr.mxu0 0.0
        %305 = vmatpush1.msra.mxu0 0.0
        %306 = vmatprep.mubr.f32.mxu0 0.0
        %307 = vmatmul.mubr.f32.gmra.mrb[0].mxu0 %v233
        %v308 = vpop.f32.mrb[0].mxu0
        %v309 = vadd.f32 0.0, %v308
        %v310 = vpop.f32.mrb[0].mxu0
        %311 = vmatprep.mubr.f32.mxu0 0.0
        %312 = vmatmul.mubr.f32.gmra.mrb[0].mxu0 %v236
        %v313 = vpop.f32.mrb[0].mxu0
        %v314 = vadd.f32 0.0, %v313
        %v315 = vpop.f32.mrb[0].mxu0
        %316 = vdwg.mxu0
        %v317 = vmul.f32 %v309, %v309
        %v318 = vmul.f32 %v314, %v314
        %v319 = vpack.c.bf16 %v318, %v317
        %320 = vst [vmem:[#allocation2] sm:$0xff] %v319
      $region36: #{simulator_sm_direct_reparam.1} parent=31 // pred_fallthru
        _
      %v321 = vld [vmem:[%s213] sm:$0xff]
      %v322 = vpack.c.bf16 %v321, %v321
      %v323 = vld [vmem:[#allocation2] sm:$0xf]
      %325 = vset.pattern.permute.xlu0 1
      %326 = vperm.xlu0 %325, %v322
      %v327 = vpop.permute.xlu0 %326
      %v329 = vmul.bf16 %v327, %v323
      %v331 = vmul.bf16 %v329, 1069105081
      %v332 = vpow.bf16.pop %v331
      %v333 = vunpack.c.l.bf16 %v332
      %334 = vset.pattern.permute.xlu0 2
      %335 = vperm.xlu0 %334, %v322
      %v336 = vpop.permute.xlu0 %335
      %v338 = vmul.bf16 %v336, %v323
      %v340 = vmul.bf16 %v338, 1069105081
      %v341 = vpow.bf16.pop %v340
      %v342 = vunpack.c.l.bf16 %v341
      %344 = vset.pattern.permute.xlu0 0
      %345 = vperm.xlu0 %344, %v321
      %v346 = vpop.permute.xlu0 %345
      %v348 = vmul.f32 %v346, %v333
      %349 = vset.pattern.permute.xlu0 3
      %350 = vperm.xlu0 %349, %v321
      %v351 = vpop.permute.xlu0 %350
      %v353 = vmul.f32 %v351, %v342
      %v354 = vadd.f32 %v348, %v353
      %v355 = vld [vmem:[#allocation2] sm:$0xf0]
      %356 = vset.pattern.permute.xlu0 5
      %357 = vperm.xlu0 %356, %v322
      %v358 = vpop.permute.xlu0 %357
      %v361 = vrot.slane %v355, 4
      %v363 = vmul.bf16 %v358, %v361
      %v365 = vmul.bf16 %v363, 1069105081
      %v366 = vpow.bf16.pop %v365
      %v367 = vunpack.c.l.bf16 %v366
      %368 = vset.pattern.permute.xlu0 6
      %369 = vperm.xlu0 %368, %v322
      %v370 = vpop.permute.xlu0 %369
      %v372 = vmul.bf16 %v370, %v361
      %v374 = vmul.bf16 %v372, 1069105081
      %v375 = vpow.bf16.pop %v374
      %v376 = vunpack.c.l.bf16 %v375
      %377 = vset.pattern.permute.xlu0 4
      %378 = vperm.xlu0 %377, %v321
      %v379 = vpop.permute.xlu0 %378
      %v381 = vmul.f32 %v379, %v367
      %382 = vset.pattern.permute.xlu0 7
      %383 = vperm.xlu0 %382, %v321
      %v384 = vpop.permute.xlu0 %383
      %v386 = vmul.f32 %v384, %v376
      %v387 = vadd.f32 %v381, %v386
      %v388 = vadd.f32 %v354, %v387
      %389 = vst [vmem:[%s221] sm:$0xff] %v388
      %s390 = smul.u32 %s18, 3
      %s391 = sadd.s32 %s390, %s19
      %p392 = scmp.lt.s32.totalorder %s391, 5
      %s393 = scalar_select %p392, %s391, 5
      %s394 = smul.addr %s393, 8
      %s395 = scalar_lea.vmem %s3, %s394
      // Predicated region
      $region37: #{simulator_sm_direct_reparam.1} parent=31 // pred_check
        %p396 = pneg %p125
      $region38: #{simulator_sm_direct_reparam.1} parent=31 // pred_check_branch
        %398 = sbr.rel (%p396) target = $region40
      $region39: #{simulator_sm_direct_reparam.1} parent=31 // pred_region
        %s399 = smul.u32 %s18, 3
        %s400 = sadd.s32 %s399, %s19
      $region40: #{simulator_sm_direct_reparam.1} parent=31 // pred_fallthru
        _
    $region32: #{simulator_sm_direct_reparam.1} parent=5 // pred_fallthru
      _
    %p401 = scmp.le.s32.totalorder 2, %s9
    // Predicated region
    $region41: #{simulator_sm_direct_reparam.1} parent=5 // pred_check
      %p402 = pneg %p401
    $region42: #{simulator_sm_direct_reparam.1} parent=5 // pred_check_branch
      %404 = sbr.rel (%p402) target = $region44
    $region43: #{simulator_sm_direct_reparam.1} parent=5 // pred_region
      %s405 = ssub.s32 %s9, 2
      // Predicated region
      $region45: #{simulator_sm_direct_reparam.1} parent=43 // pred_check
        %p406 = pneg %p131
      $region46: #{simulator_sm_direct_reparam.1} parent=43 // pred_check_branch
        %408 = sbr.rel (%p406) target = $region48
      $region47: #{simulator_sm_direct_reparam.1} parent=43 // pred_region
        %s409 = smul.u32 %s20, 3
        %s410 = sadd.s32 %s409, %s21
        %p411 = scmp.lt.s32.totalorder %s410, 5
        %s412 = scalar_select %p411, %s410, 5
        %s413 = smul.addr %s412, 8
        %s414 = scalar_lea.vmem %s3, %s413
      $region48: #{simulator_sm_direct_reparam.1} parent=43 // pred_fallthru
        _
    $region44: #{simulator_sm_direct_reparam.1} parent=5 // pred_fallthru
      _
  $region6: #{simulator_sm_direct_reparam.1} parent=0 // loop_footer
    %s13 = sadd.s32 1, %s9
  $region7: #{simulator_sm_direct_reparam.1} parent=0 // loop_footer_branch
    %8 = sbr.rel target = $region3
  $region8: #{simulator_sm_direct_reparam.1} parent=0 // loop_exit
    _

</llo_original>
